<compile_context>
chip_gen: v7x
topology: tpu7x:2x2x1
jax: 0.10.0
libtpu: 0.0.40
codegen_flags: <defaults>
</compile_context>

<pallas_src>
import functools
import math

import jax
import jax.numpy as jnp
import numpy as np
from jax import lax
from jax.experimental import pallas as pl
from jax.experimental.pallas import tpu as pltpu

_MXU_DTYPE = jnp.bfloat16            # MXU operand dtype; accumulation stays f32
_VMEM_LIMIT = 32 * 1024 * 1024       # explicit scoped-VMEM budget (safe on v5e/v6e/v7x)


def _resident_spec(shape, index_map, single_buffer):
    """BlockSpec for grid-invariant operands (weights / biases).

    single_buffer=True keeps them as single-buffered VMEM residents instead of
    the default double-buffering (saves a full parameter footprint of VMEM).
    """
    if single_buffer:
        return pl.BlockSpec(shape, index_map, pipeline_mode=pl.Buffered(1))
    return pl.BlockSpec(shape, index_map)


# ---------------------------------------------------------------------------
# Projection kernel: y = (x @ W + b) * scale over row tiles of the flattened
# (batch*seq, embed) input.
# ---------------------------------------------------------------------------
def _linear_kernel(x_ref, w_ref, b_ref, o_ref, *, scale):
    x = x_ref[...].astype(w_ref.dtype)                       # bf16 MXU operand
    y = jnp.dot(x, w_ref[...], preferred_element_type=jnp.float32) + b_ref[0]
    if scale != 1.0:                                         # softmax scale folded into Q
        y = y * scale
    o_ref[...] = y.astype(o_ref.dtype)


def _linear(x2d, w_bf16, b2d, *, scale, single_buffer_weights, row_tile=512):
    rows, in_dim = x2d.shape
    out_dim = w_bf16.shape[1]
    tm = rows if rows <= row_tile else row_tile
    if tm != rows:
        tm = max(8, (tm // 8) * 8)                           # (8,128) sublane rule
    grid = (pl.cdiv(rows, tm),)

    return pl.pallas_call(
        functools.partial(_linear_kernel, scale=scale),
        out_shape=jax.ShapeDtypeStruct((rows, out_dim), _MXU_DTYPE),
        grid_spec=pltpu.PrefetchScalarGridSpec(
            num_scalar_prefetch=0,
            grid=grid,
            in_specs=[
                pl.BlockSpec((tm, in_dim), lambda i: (i, 0)),
                _resident_spec((in_dim, out_dim), lambda i: (0, 0), single_buffer_weights),
                _resident_spec((1, out_dim), lambda i: (0, 0), single_buffer_weights),
            ],
            out_specs=pl.BlockSpec((tm, out_dim), lambda i: (i, 0)),
        ),
        compiler_params=pltpu.CompilerParams(
            dimension_semantics=("parallel",),
            vmem_limit_bytes=_VMEM_LIMIT,
        ),
    )(x2d, w_bf16, b2d)


# ---------------------------------------------------------------------------
# Attention kernel: per (batch, q_tile) grid step.
# ---------------------------------------------------------------------------
def _attention_kernel(q_ref, k_ref, v_ref, wo_ref, bo_ref, o_ref, z_ref,
                      *, n_heads, kq_dim, v_dim):
    q = q_ref[0]                                   # (tq,  H*Dk) bf16 (pre-scaled)
    k = k_ref[0]                                   # (Lkv, H*Dk) bf16
    v = v_ref[0]                                   # (Lkv, H*Dv) bf16

    for h in range(n_heads):
        qh = q[:, h * kq_dim:(h + 1) * kq_dim]
        kh = k[:, h * kq_dim:(h + 1) * kq_dim]
        vh = v[:, h * v_dim:(h + 1) * v_dim]

        # Contract on the stored feature axis -> no explicit transpose (no XLU pass).
        s = lax.dot_general(qh, kh, (((1,), (1,)), ((), ())),
                            preferred_element_type=jnp.float32)       # (tq, Lkv)
        s = s - jnp.max(s, axis=-1, keepdims=True)
        p = jnp.exp(s)
        p = p * pl.reciprocal(jnp.sum(p, axis=-1, keepdims=True), approx=True)

        z_ref[:, h * v_dim:(h + 1) * v_dim] = jnp.dot(
            p.astype(v.dtype), vh, preferred_element_type=jnp.float32)

    # Single output projection over the concatenated head outputs.
    z = z_ref[...].astype(wo_ref.dtype)
    out = jnp.dot(z, wo_ref[...], preferred_element_type=jnp.float32) + bo_ref[0]
    o_ref[0] = out.astype(o_ref.dtype)


def _attention(q_p, k_p, v_p, wo_bf16, bo2d, out_dtype,
               *, n_heads, kq_dim, v_dim, single_buffer_weights, q_tile=512):
    batch, lq, hdk = q_p.shape
    _, lkv, hdv = v_p.shape
    embed_dim = wo_bf16.shape[1]

    tq = lq if lq <= q_tile else q_tile
    if tq != lq:
        tq = max(8, (tq // 8) * 8)
    grid = (batch, pl.cdiv(lq, tq))

    kernel = functools.partial(_attention_kernel,
                               n_heads=n_heads, kq_dim=kq_dim, v_dim=v_dim)

    return pl.pallas_call(
        kernel,
        out_shape=jax.ShapeDtypeStruct((batch, lq, embed_dim), out_dtype),
        grid_spec=pltpu.PrefetchScalarGridSpec(
            num_scalar_prefetch=0,
            grid=grid,
            in_specs=[
                pl.BlockSpec((1, tq, hdk), lambda b, qi: (b, qi, 0)),
                pl.BlockSpec((1, lkv, hdk), lambda b, qi: (b, 0, 0)),
                pl.BlockSpec((1, lkv, hdv), lambda b, qi: (b, 0, 0)),
                _resident_spec((hdv, embed_dim), lambda b, qi: (0, 0), single_buffer_weights),
                _resident_spec((1, embed_dim), lambda b, qi: (0, 0), single_buffer_weights),
            ],
            out_specs=pl.BlockSpec((1, tq, embed_dim), lambda b, qi: (b, qi, 0)),
            scratch_shapes=[pltpu.VMEM((tq, n_heads * v_dim), jnp.float32)],
        ),
        compiler_params=pltpu.CompilerParams(
            dimension_semantics=("parallel", "parallel"),
            vmem_limit_bytes=_VMEM_LIMIT,
        ),
    )(q_p, k_p, v_p, wo_bf16, bo2d)


# ---------------------------------------------------------------------------
# Full forward.
# ---------------------------------------------------------------------------
def _forward(queries, keys, values, params, *, n_heads, kq_dim, v_dim, scale,
             single_buffer_weights):
    wq, bq, wk, bk, wv, bv, wo, bo = params
    batch, lq, embed_dim = queries.shape
    _, lkv, _ = keys.shape

    # One-time weight prep: bf16 MXU operands; biases stay f32 (added after f32 acc).
    wq_b, wk_b, wv_b, wo_b = (w.astype(_MXU_DTYPE) for w in (wq, wk, wv, wo))
    bq2, bk2, bv2, bo2 = (b.reshape(1, -1) for b in (bq, bk, bv, bo))

    # Q/K/V projections over batch-flattened rows (large M fills the MXU pipeline).
    q_p = _linear(queries.reshape(batch * lq, embed_dim), wq_b, bq2,
                  scale=scale, single_buffer_weights=single_buffer_weights)
    k_p = _linear(keys.reshape(batch * lkv, embed_dim), wk_b, bk2,
                  scale=1.0, single_buffer_weights=single_buffer_weights)
    v_p = _linear(values.reshape(batch * lkv, embed_dim), wv_b, bv2,
                  scale=1.0, single_buffer_weights=single_buffer_weights)
    q_p = q_p.reshape(batch, lq, -1)
    k_p = k_p.reshape(batch, lkv, -1)
    v_p = v_p.reshape(batch, lkv, -1)

    return _attention(q_p, k_p, v_p, wo_b, bo2, queries.dtype,
                      n_heads=n_heads, kq_dim=kq_dim, v_dim=v_dim,
                      single_buffer_weights=single_buffer_weights)


def full_attention(queries, keys, values, params, *, n_heads, kq_dim, v_dim, scale):
    """queries: (B, Lq, E); keys/values: (B, Lkv, E). Returns (B, Lq, E)."""
    try:
        return _forward(queries, keys, values, params, n_heads=n_heads,
                        kq_dim=kq_dim, v_dim=v_dim, scale=scale,
                        single_buffer_weights=True)
    except Exception:
        # Fall back to default double-buffered weight specs if this Pallas
        # version rejects pipeline_mode=pl.Buffered(1).
        return _forward(queries, keys, values, params, n_heads=n_heads,
                        kq_dim=kq_dim, v_dim=v_dim, scale=scale,
                        single_buffer_weights=False)


# ---------------------------------------------------------------------------
# References.
# ---------------------------------------------------------------------------
def _reference_f32(queries, keys, values, params, *, n_heads, kq_dim, v_dim, scale):
    """Pure-JAX f32 reference mirroring the PyTorch forward exactly."""
    wq, bq, wk, bk, wv, bv, wo, bo = params
    b, lq, _ = queries.shape
    _, lkv, _ = values.shape
    qp = (queries @ wq + bq).reshape(b, lq, n_heads, kq_dim).transpose(0, 2, 1, 3)
    kp = (keys @ wk + bk).reshape(b, lkv, n_heads, kq_dim).transpose(0, 2, 1, 3)
    vp = (values @ wv + bv).reshape(b, lkv, n_heads, v_dim).transpose(0, 2, 1, 3)
    scores = jnp.einsum("bhqd,bhkd->bhqk", qp, kp) * scale
    scores = jax.nn.softmax(scores, axis=-1)
    z = jnp.einsum("bhqk,bhkd->bhqd", scores, vp)
    z = z.transpose(0, 2, 1, 3).reshape(b, lq, n_heads * v_dim)
    return z @ wo + bo


def _reference_matched(queries, keys, values, params, *, n_heads, kq_dim, v_dim, scale):
    """Mirrors the kernel's bf16-operand / f32-accumulate dot placement."""
    wq, bq, wk, bk, wv, bv, wo, bo = params
    bf = _MXU_DTYPE

    def lin(x, w, b, s=None):
        y = jnp.dot(x.astype(bf), w.astype(bf), preferred_element_type=jnp.float32) + b
        if s is not None:
            y = y * s
        return y.astype(bf)

    b_, lq, _ = queries.shape
    _, lkv, _ = values.shape
    qp = lin(queries, wq, bq, scale).reshape(b_, lq, n_heads, kq_dim).transpose(0, 2, 1, 3)
    kp = lin(keys, wk, bk).reshape(b_, lkv, n_heads, kq_dim).transpose(0, 2, 1, 3)
    vp = lin(values, wv, bv).reshape(b_, lkv, n_heads, v_dim).transpose(0, 2, 1, 3)
    s = jnp.einsum("bhqd,bhkd->bhqk", qp, kp, preferred_element_type=jnp.float32)
    p = jax.nn.softmax(s, axis=-1)
    z = jnp.einsum("bhqk,bhkd->bhqd", p.astype(bf), vp, preferred_element_type=jnp.float32)
    z = z.transpose(0, 2, 1, 3).reshape(b_, lq, n_heads * v_dim).astype(bf)
    return jnp.dot(z, wo.astype(bf), preferred_element_type=jnp.float32) + bo


if __name__ == "__main__":
    batch = 2
    seq_q = 8
    seq_kv = 8
    embed_dim = 32
    n_heads = 4
    kq_dim = embed_dim // n_heads   # 8
    v_dim = embed_dim // n_heads    # 8
    scale = 1.0 / math.sqrt(kq_dim)

    key = jax.random.PRNGKey(0)
    ks = jax.random.split(key, 12)

    def init_w(k, fan_in, fan_out):
        bound = 1.0 / math.sqrt(fan_in)
        return jax.random.uniform(k, (fan_in, fan_out), jnp.float32, -bound, bound)

    def init_b(k, fan_in, fan_out):
        bound = 1.0 / math.sqrt(fan_in)
        return jax.random.uniform(k, (fan_out,), jnp.float32, -bound, bound)

    wq = init_w(ks[0], embed_dim, kq_dim * n_heads)
    bq = init_b(ks[1], embed_dim, kq_dim * n_heads)
    wk = init_w(ks[2], embed_dim, kq_dim * n_heads)
    bk = init_b(ks[3], embed_dim, kq_dim * n_heads)
    wv = init_w(ks[4], embed_dim, v_dim * n_heads)
    bv = init_b(ks[5], embed_dim, v_dim * n_heads)
    wo = init_w(ks[6], v_dim * n_heads, embed_dim)
    bo = init_b(ks[7], v_dim * n_heads, embed_dim)
    params = (wq, bq, wk, bk, wv, bv, wo, bo)

    queries = jax.random.normal(ks[8], (batch, seq_q, embed_dim), jnp.float32)
    keys = jax.random.normal(ks[9], (batch, seq_kv, embed_dim), jnp.float32)
    values = jax.random.normal(ks[10], (batch, seq_kv, embed_dim), jnp.float32)

    out = full_attention(queries, keys, values, params,
                         n_heads=n_heads, kq_dim=kq_dim, v_dim=v_dim, scale=scale)
    out = jax.block_until_ready(out)

    ref_matched = _reference_matched(queries, keys, values, params,
                                     n_heads=n_heads, kq_dim=kq_dim, v_dim=v_dim,
                                     scale=scale)
    ref_f32 = _reference_f32(queries, keys, values, params,
                             n_heads=n_heads, kq_dim=kq_dim, v_dim=v_dim, scale=scale)

    # Tight check against a reference with identical bf16-operand placement.
    np.testing.assert_allclose(np.asarray(out), np.asarray(ref_matched),
                               rtol=5e-3, atol=5e-3)
    # Looser semantic check against the pure-f32 reference (bf16 MXU operands).
    np.testing.assert_allclose(np.asarray(out), np.asarray(ref_f32),
                               rtol=2e-2, atol=2e-2)

    print("KERNEL_OK")
</pallas_src>

<mosaic_0001>
module attributes {stable_mosaic.version = 11 : i64} {
  func.func @_linear_kernel(%arg0: i32, %arg1: memref<16x32xf32, #tpu.memory_space<vmem>>, %arg2: memref<32x32xbf16, #tpu.memory_space<vmem>>, %arg3: memref<1x32xf32, #tpu.memory_space<vmem>>, %arg4: memref<16x32xbf16, #tpu.memory_space<vmem>>) attributes {dimension_semantics = [#tpu.dimension_semantics<parallel>], iteration_bounds = array<i64: 1>, scalar_prefetch = 0 : i64, scratch_operands = 0 : i64, tpu.core_type = #tpu.core_type<tc>, window_params = [{transform_indices = @transform_0, window_bounds = array<i64: 16, 32>}, {pipeline_mode = #tpu.pipeline_mode<synchronous>, transform_indices = @transform_1, window_bounds = array<i64: 32, 32>}, {pipeline_mode = #tpu.pipeline_mode<synchronous>, transform_indices = @transform_2, window_bounds = array<i64: 1, 32>}, {transform_indices = @transform_3, window_bounds = array<i64: 16, 32>}]} {
    %c0 = arith.constant 0 : index
    %c0_0 = arith.constant 0 : index
    %0 = vector.load %arg1[%c0, %c0_0] : memref<16x32xf32, #tpu.memory_space<vmem>>, vector<16x32xf32>
    %1 = arith.truncf %0 : vector<16x32xf32> to vector<16x32xbf16>
    %c0_1 = arith.constant 0 : index
    %c0_2 = arith.constant 0 : index
    %2 = vector.load %arg2[%c0_1, %c0_2] : memref<32x32xbf16, #tpu.memory_space<vmem>>, vector<32x32xbf16>
    %cst = arith.constant dense<0.000000e+00> : vector<16x32xf32>
    %3 = tpu.matmul %1, %2, %cst {dimension_numbers = #tpu.dot_dimension_numbers<[1], [0], [0], [1], [0, 0, 1, 1], [], []>} : vector<16x32xbf16>, vector<32x32xbf16>, vector<16x32xf32> -> vector<16x32xf32>
    %c0_3 = arith.constant 0 : index
    %c0_4 = arith.constant 0 : index
    %4 = vector.load %arg3[%c0_3, %c0_4] : memref<1x32xf32, #tpu.memory_space<vmem>>, vector<1x32xf32>
    %5 = vector.shape_cast %4 : vector<1x32xf32> to vector<32xf32>
    %6 = vector.shape_cast %5 : vector<32xf32> to vector<1x32xf32>
    %7 = vector.broadcast %6 : vector<1x32xf32> to vector<16x32xf32>
    %8 = arith.addf %3, %7 : vector<16x32xf32>
    %cst_5 = arith.constant 0.353553385 : f32
    %9 = vector.broadcast %cst_5 : f32 to vector<16x32xf32>
    %10 = arith.mulf %8, %9 : vector<16x32xf32>
    %11 = arith.truncf %10 : vector<16x32xf32> to vector<16x32xbf16>
    %c0_6 = arith.constant 0 : index
    %c0_7 = arith.constant 0 : index
    %12 = vector.load %arg4[%c0_6, %c0_7] : memref<16x32xbf16, #tpu.memory_space<vmem>>, vector<16x32xbf16>
    tpu.vector_store %arg4[%c0_6, %c0_7], %11 {strides = array<i32>} : memref<16x32xbf16, #tpu.memory_space<vmem>>, vector<16x32xbf16>,
    return
  }
  func.func @transform_0(%arg0: i32) -> (i32, i32) {
    %c0_i32 = arith.constant 0 : i32
    %c0_i32_0 = arith.constant 0 : i32
    return %arg0, %c0_i32 : i32, i32
  }
  func.func @transform_1(%arg0: i32) -> (i32, i32) {
    %c0_i32 = arith.constant 0 : i32
    %c0_i32_0 = arith.constant 0 : i32
    %c0_i32_1 = arith.constant 0 : i32
    return %c0_i32, %c0_i32_0 : i32, i32
  }
  func.func @transform_2(%arg0: i32) -> (i32, i32) {
    %c0_i32 = arith.constant 0 : i32
    %c0_i32_0 = arith.constant 0 : i32
    %c0_i32_1 = arith.constant 0 : i32
    return %c0_i32, %c0_i32_0 : i32, i32
  }
  func.func @transform_3(%arg0: i32) -> (i32, i32) {
    %c0_i32 = arith.constant 0 : i32
    %c0_i32_0 = arith.constant 0 : i32
    return %arg0, %c0_i32 : i32, i32
  }
}

module attributes {stable_mosaic.version = 11 : i64} {
  func.func @_linear_kernel(%arg0: i32, %arg1: memref<16x32xf32, #tpu.memory_space<vmem>>, %arg2: memref<32x32xbf16, #tpu.memory_space<vmem>>, %arg3: memref<1x32xf32, #tpu.memory_space<vmem>>, %arg4: memref<16x32xbf16, #tpu.memory_space<vmem>>) attributes {dimension_semantics = [#tpu.dimension_semantics<parallel>], iteration_bounds = array<i64: 1>, scalar_prefetch = 0 : i64, scratch_operands = 0 : i64, tpu.core_type = #tpu.core_type<tc>, window_params = [{transform_indices = @transform_0, window_bounds = array<i64: 16, 32>}, {pipeline_mode = #tpu.pipeline_mode<synchronous>, transform_indices = @transform_1, window_bounds = array<i64: 32, 32>}, {pipeline_mode = #tpu.pipeline_mode<synchronous>, transform_indices = @transform_2, window_bounds = array<i64: 1, 32>}, {transform_indices = @transform_3, window_bounds = array<i64: 16, 32>}]} {
    %c0 = arith.constant 0 : index
    %c0_0 = arith.constant 0 : index
    %0 = vector.load %arg1[%c0, %c0_0] : memref<16x32xf32, #tpu.memory_space<vmem>>, vector<16x32xf32>
    %1 = arith.truncf %0 : vector<16x32xf32> to vector<16x32xbf16>
    %c0_1 = arith.constant 0 : index
    %c0_2 = arith.constant 0 : index
    %2 = vector.load %arg2[%c0_1, %c0_2] : memref<32x32xbf16, #tpu.memory_space<vmem>>, vector<32x32xbf16>
    %cst = arith.constant dense<0.000000e+00> : vector<16x32xf32>
    %3 = tpu.matmul %1, %2, %cst {dimension_numbers = #tpu.dot_dimension_numbers<[1], [0], [0], [1], [0, 0, 1, 1], [], []>} : vector<16x32xbf16>, vector<32x32xbf16>, vector<16x32xf32> -> vector<16x32xf32>
    %c0_3 = arith.constant 0 : index
    %c0_4 = arith.constant 0 : index
    %4 = vector.load %arg3[%c0_3, %c0_4] : memref<1x32xf32, #tpu.memory_space<vmem>>, vector<1x32xf32>
    %5 = vector.shape_cast %4 : vector<1x32xf32> to vector<32xf32>
    %6 = vector.shape_cast %5 : vector<32xf32> to vector<1x32xf32>
    %7 = vector.broadcast %6 : vector<1x32xf32> to vector<16x32xf32>
    %8 = arith.addf %3, %7 : vector<16x32xf32>
    %cst_5 = arith.constant 0.353553385 : f32
    %9 = vector.broadcast %cst_5 : f32 to vector<16x32xf32>
    %10 = arith.mulf %8, %9 : vector<16x32xf32>
    %11 = arith.truncf %10 : vector<16x32xf32> to vector<16x32xbf16>
    %c0_6 = arith.constant 0 : index
    %c0_7 = arith.constant 0 : index
    %12 = vector.load %arg4[%c0_6, %c0_7] : memref<16x32xbf16, #tpu.memory_space<vmem>>, vector<16x32xbf16>
    tpu.vector_store %arg4[%c0_6, %c0_7], %11 {strides = array<i32>} : memref<16x32xbf16, #tpu.memory_space<vmem>>, vector<16x32xbf16>,
    return
  }
  func.func @transform_0(%arg0: i32) -> (i32, i32) {
    %c0_i32 = arith.constant 0 : i32
    %c0_i32_0 = arith.constant 0 : i32
    return %arg0, %c0_i32 : i32, i32
  }
  func.func @transform_1(%arg0: i32) -> (i32, i32) {
    %c0_i32 = arith.constant 0 : i32
    %c0_i32_0 = arith.constant 0 : i32
    %c0_i32_1 = arith.constant 0 : i32
    return %c0_i32, %c0_i32_0 : i32, i32
  }
  func.func @transform_2(%arg0: i32) -> (i32, i32) {
    %c0_i32 = arith.constant 0 : i32
    %c0_i32_0 = arith.constant 0 : i32
    %c0_i32_1 = arith.constant 0 : i32
    return %c0_i32, %c0_i32_0 : i32, i32
  }
  func.func @transform_3(%arg0: i32) -> (i32, i32) {
    %c0_i32 = arith.constant 0 : i32
    %c0_i32_0 = arith.constant 0 : i32
    return %arg0, %c0_i32 : i32, i32
  }
}

</mosaic_0001>

<llo_original>
// kernel: tpu_custom_call.1
$region0: #{tpu_custom_call.1}
  #allocation0 [shape = 'u32[]', space=smem, size = 0x4, offset = 0x4, fixed_abs, tag = 'smem constant byte address 0x4 - core index']
  #allocation1 [shape = 'u32[144,128]{1,0:T(1,128)}', space=vmem, size = 0x12000, scoped, tag = 'internal scratch']
  %s0 = inlined_call_operand.hbm [shape: f32[16,32], index: 0, kind: input, shape index: {}]
  %s1 = inlined_call_operand.hbm [shape: bf16[32,32], index: 1, kind: input, shape index: {}]
  %s2 = inlined_call_operand.vmem [shape: f32[1,32], index: 2, kind: input, shape index: {}]
  %s3 = inlined_call_operand.hbm [shape: bf16[16,32], index: 3, kind: output, shape index: {}]
  %s4 = sld [smem:[#allocation0]]
  $region30: #{tpu_custom_call.1} parent=0
    _
  %s6 = ssub.s32 1, %s4
  %s7 = scalar_select 0, %s6, %s4
  $region1: #{tpu_custom_call.1} parent=0
    #allocation2 [shape = 'u8[8192]{0}', space=vmem, size = 0x2000, scoped, tag = 'input window, operand 0, single buffered']
    #allocation3 [shape = 's32[1]{0}', space=sflag, size = 0x4, scoped, tag = 'scoped memory for tpu_custom_call.1']
    #allocation4 [shape = 's32[1]{0}', space=sflag, size = 0x4, scoped, tag = 'scoped memory for tpu_custom_call.1']
    #allocation5 [shape = 'u8[8192]{0}', space=vmem, size = 0x2000, scoped, tag = 'input window, operand 1, single buffered']
    #allocation6 [shape = 's32[1]{0}', space=sflag, size = 0x4, scoped, tag = 'scoped memory for tpu_custom_call.1']
    #allocation7 [shape = 'u8[4096]{0}', space=vmem, size = 0x1000, scoped, tag = 'output window, operand 0, single buffered']
    %8 = vsyncpa [#allocation3], 0
    %9 = vsyncpa [#allocation6], 0
    %10 = vsyncpa [#allocation4], 0
    // Predicated region
    $region2: #{tpu_custom_call.1} parent=1 // pred_check
      _
    $region3: #{tpu_custom_call.1} parent=1 // pred_check_branch
      %12 = sbr.rel (0) target = $region5
    $region4: #{tpu_custom_call.1} parent=1 // pred_region
      %s14 = ssub.s32 256, 256
      %15 = vsyncadd [#allocation3], %s14
      %s16 = sshll.u32 [#allocation2], 4
      %s17 = int_to_ptr.vmem [resolvable:$true] %s16
      %22 = dma.hbm_to_vmem [thread:$0]  %s0, 256, %s17, [#allocation3], 128, 128, 8
    $region5: #{tpu_custom_call.1} parent=1 // pred_fallthru
      _
    // Predicated region
    $region6: #{tpu_custom_call.1} parent=1 // pred_check
      _
    $region7: #{tpu_custom_call.1} parent=1 // pred_check_branch
      %24 = sbr.rel (0) target = $region9
    $region8: #{tpu_custom_call.1} parent=1 // pred_region
      %s26 = ssub.s32 256, 256
      %27 = vsyncadd [#allocation6], %s26
      %s28 = sshll.u32 [#allocation5], 4
      %s29 = int_to_ptr.vmem [resolvable:$true] %s28
      %34 = dma.hbm_to_vmem [thread:$0]  %s1, 256, %s29, [#allocation6], 64, 64, 4
    $region9: #{tpu_custom_call.1} parent=1 // pred_fallthru
      _
    // Predicated region
    $region10: #{tpu_custom_call.1} parent=1 // pred_check
      _
    $region11: #{tpu_custom_call.1} parent=1 // pred_check_branch
      %36 = sbr.rel (0) target = $region13
    $region12: #{tpu_custom_call.1} parent=1 // pred_region
      _
    $region13: #{tpu_custom_call.1} parent=1 // pred_fallthru
      _
    // Predicated region
    $region14: #{tpu_custom_call.1} parent=1 // pred_check
      _
    $region15: #{tpu_custom_call.1} parent=1 // pred_check_branch
      %38 = sbr.rel (0) target = $region17
    $region16: #{tpu_custom_call.1} parent=1 // pred_region
      %39 = dma.done [#allocation3], 256
    $region17: #{tpu_custom_call.1} parent=1 // pred_fallthru
      _
    // Predicated region
    $region18: #{tpu_custom_call.1} parent=1 // pred_check
      _
    $region19: #{tpu_custom_call.1} parent=1 // pred_check_branch
      %41 = sbr.rel (0) target = $region21
    $region20: #{tpu_custom_call.1} parent=1 // pred_region
      %42 = dma.done [#allocation6], 256
    $region21: #{tpu_custom_call.1} parent=1 // pred_fallthru
      _
    %v44 = vld [vmem:[#allocation2] sm:$0xff]
    %v45 = vld [vmem:[#allocation2 + $0x8] sm:$0xff]
    %v46 = vpack.c.bf16 %v45, %v44
    %v47 = vld [vmem:[#allocation5] sm:$0xf]
    %v48 = vld [vmem:[#allocation5 + $0x4] sm:$0xf]
    %v49 = vld [vmem:[#allocation5 + $0x8] sm:$0xf]
    %v50 = vld [vmem:[#allocation5 + $0xc] sm:$0xf]
    %v51 = vld [vmem:[%s2] sm:$0x1]
    %v53 = vlaneseq
    %v54 = vshrl.u32 %v53, 7
    %v55 = vsub.s32 0, %v54
    %v56 = vrot.slane %v51, %v55
    %v62 = vunpack.c.l.b16 %v47
    %v63 = vunpack.c.l.b16 %v48
    %v64 = vunpack.c.l.b16 %v49
    %v65 = vunpack.c.l.b16 %v50
    %v66 = vpack.c.b16 %v63, %v62
    %v67 = vpack.c.b16 %v65, %v64
    %vm70 = vcmask 261120
    %v72 = vsel %vm70, %v46, 0
    %74 = vmatprep.subr.bf16.mxu0 0
    %75 = vmatpush1.bf16.msra.mxu0 %v66
    %76 = vmatprep.subr.bf16.mxu0 0
    %77 = vmatpush1.bf16.msra.mxu0 %v67
    %78 = vmatprep.subr.bf16.mxu0 0
    %79 = vmatpush1.bf16.msra.mxu0 0
    %80 = vmatprep.subr.bf16.mxu0 0
    %81 = vmatpush1.bf16.msra.mxu0 0
    %82 = vmatprep.subr.bf16.mxu0 0
    %83 = vmatpush1.bf16.msra.mxu0 0
    %84 = vmatprep.subr.bf16.mxu0 0
    %85 = vmatpush1.bf16.msra.mxu0 0
    %86 = vmatprep.subr.bf16.mxu0 0
    %87 = vmatpush1.bf16.msra.mxu0 0
    %88 = vmatprep.subr.bf16.mxu0 0
    %89 = vmatpush1.bf16.msra.mxu0 0
    %90 = vmatprep.subr.bf16.mxu0 0
    %91 = vmatpush1.bf16.msra.mxu0 0
    %92 = vmatprep.subr.bf16.mxu0 0
    %93 = vmatpush1.bf16.msra.mxu0 0
    %94 = vmatprep.subr.bf16.mxu0 0
    %95 = vmatpush1.bf16.msra.mxu0 0
    %96 = vmatprep.subr.bf16.mxu0 0
    %97 = vmatpush1.bf16.msra.mxu0 0
    %98 = vmatprep.subr.bf16.mxu0 0
    %99 = vmatpush1.bf16.msra.mxu0 0
    %100 = vmatprep.subr.bf16.mxu0 0
    %101 = vmatpush1.bf16.msra.mxu0 0
    %102 = vmatprep.subr.bf16.mxu0 0
    %103 = vmatpush1.bf16.msra.mxu0 0
    %104 = vmatprep.subr.bf16.mxu0 0
    %105 = vmatpush1.bf16.msra.mxu0 0
    %106 = vmatprep.mubr.bf16.mxu0 0
    %107 = vmatmul.mubr.bf16.gmra.mrb[0].mxu0 %v72
    %v108 = vpop.f32.mrb[0].mxu0
    %v109 = vadd.f32 %v56, %v108
    %v110 = vpop.f32.mrb[0].mxu0
    %v111 = vpop.f32.mrb[0].mxu0
    %v112 = vadd.f32 %v56, %v111
    %v113 = vpop.f32.mrb[0].mxu0
    %114 = vdwg.mxu0
    %v115 = vmul.f32 %v109, 0.35355338
    %v116 = vmul.f32 %v112, 0.35355338
    %v117 = vpack.c.bf16 %v116, %v115
    %v119 = vunpack.c.l.b16 %v117
    %v120 = vunpack.c.h.b16 %v117
    %v121 = vpack.c.b16 %v119, %v119
    %v122 = vpack.c.b16 %v120, %v120
    %vm125 = vcmask 257024
    %126 = vst.msk [vmem:[#allocation7] sm:$0xf] %vm125, %v121
    %127 = vst.msk [vmem:[#allocation7 + $0x4] sm:$0xf] %vm125, %v122
    // Predicated region
    $region22: #{tpu_custom_call.1} parent=1 // pred_check
      _
    $region23: #{tpu_custom_call.1} parent=1 // pred_check_branch
      %129 = sbr.rel (0) target = $region25
    $region24: #{tpu_custom_call.1} parent=1 // pred_region
      %s131 = ssub.s32 128, 128
      %132 = vsyncadd [#allocation4], %s131
      %s133 = sshll.u32 [#allocation7], 4
      %s134 = int_to_ptr.vmem [resolvable:$true] %s133
      %139 = dma.vmem_to_hbm [thread:$0]  %s134, 128, %s3, [#allocation4], 64, 64, 4
    $region25: #{tpu_custom_call.1} parent=1 // pred_fallthru
      _
    // Predicated region
    $region26: #{tpu_custom_call.1} parent=1 // pred_check
      _
    $region27: #{tpu_custom_call.1} parent=1 // pred_check_branch
      %141 = sbr.rel (0) target = $region29
    $region28: #{tpu_custom_call.1} parent=1 // pred_region
      %142 = dma.done [#allocation4], 128
    $region29: #{tpu_custom_call.1} parent=1 // pred_fallthru
      _
    %143 = vsyncpa [#allocation3], 1
    %144 = vsyncpa [#allocation6], 1
    %145 = vsyncpa [#allocation4], 1

// kernel: tpu_custom_call.1
$region0: #{tpu_custom_call.1}
  #allocation0 [shape = 'u32[]', space=smem, size = 0x4, offset = 0x4, fixed_abs, tag = 'smem constant byte address 0x4 - core index']
  #allocation1 [shape = 'u32[144,128]{1,0:T(1,128)}', space=vmem, size = 0x12000, scoped, tag = 'internal scratch']
  %s0 = inlined_call_operand.hbm [shape: f32[16,32], index: 0, kind: input, shape index: {}]
  %s1 = inlined_call_operand.hbm [shape: bf16[32,32], index: 1, kind: input, shape index: {}]
  %s2 = inlined_call_operand.vmem [shape: f32[1,32], index: 2, kind: input, shape index: {}]
  %s3 = inlined_call_operand.hbm [shape: bf16[16,32], index: 3, kind: output, shape index: {}]
  %s4 = sld [smem:[#allocation0]]
  $region30: #{tpu_custom_call.1} parent=0
    _
  %s6 = ssub.s32 1, %s4
  %s7 = scalar_select 0, %s6, %s4
  $region1: #{tpu_custom_call.1} parent=0
    #allocation2 [shape = 'u8[8192]{0}', space=vmem, size = 0x2000, scoped, tag = 'input window, operand 0, single buffered']
    #allocation3 [shape = 's32[1]{0}', space=sflag, size = 0x4, scoped, tag = 'scoped memory for tpu_custom_call.1']
    #allocation4 [shape = 's32[1]{0}', space=sflag, size = 0x4, scoped, tag = 'scoped memory for tpu_custom_call.1']
    #allocation5 [shape = 'u8[8192]{0}', space=vmem, size = 0x2000, scoped, tag = 'input window, operand 1, single buffered']
    #allocation6 [shape = 's32[1]{0}', space=sflag, size = 0x4, scoped, tag = 'scoped memory for tpu_custom_call.1']
    #allocation7 [shape = 'u8[4096]{0}', space=vmem, size = 0x1000, scoped, tag = 'output window, operand 0, single buffered']
    %8 = vsyncpa [#allocation3], 0
    %9 = vsyncpa [#allocation6], 0
    %10 = vsyncpa [#allocation4], 0
    // Predicated region
    $region2: #{tpu_custom_call.1} parent=1 // pred_check
      _
    $region3: #{tpu_custom_call.1} parent=1 // pred_check_branch
      %12 = sbr.rel (0) target = $region5
    $region4: #{tpu_custom_call.1} parent=1 // pred_region
      %s14 = ssub.s32 256, 256
      %15 = vsyncadd [#allocation3], %s14
      %s16 = sshll.u32 [#allocation2], 4
      %s17 = int_to_ptr.vmem [resolvable:$true] %s16
      %22 = dma.hbm_to_vmem [thread:$0]  %s0, 256, %s17, [#allocation3], 128, 128, 8
    $region5: #{tpu_custom_call.1} parent=1 // pred_fallthru
      _
    // Predicated region
    $region6: #{tpu_custom_call.1} parent=1 // pred_check
      _
    $region7: #{tpu_custom_call.1} parent=1 // pred_check_branch
      %24 = sbr.rel (0) target = $region9
    $region8: #{tpu_custom_call.1} parent=1 // pred_region
      %s26 = ssub.s32 256, 256
      %27 = vsyncadd [#allocation6], %s26
      %s28 = sshll.u32 [#allocation5], 4
      %s29 = int_to_ptr.vmem [resolvable:$true] %s28
      %34 = dma.hbm_to_vmem [thread:$0]  %s1, 256, %s29, [#allocation6], 64, 64, 4
    $region9: #{tpu_custom_call.1} parent=1 // pred_fallthru
      _
    // Predicated region
    $region10: #{tpu_custom_call.1} parent=1 // pred_check
      _
    $region11: #{tpu_custom_call.1} parent=1 // pred_check_branch
      %36 = sbr.rel (0) target = $region13
    $region12: #{tpu_custom_call.1} parent=1 // pred_region
      _
    $region13: #{tpu_custom_call.1} parent=1 // pred_fallthru
      _
    // Predicated region
    $region14: #{tpu_custom_call.1} parent=1 // pred_check
      _
    $region15: #{tpu_custom_call.1} parent=1 // pred_check_branch
      %38 = sbr.rel (0) target = $region17
    $region16: #{tpu_custom_call.1} parent=1 // pred_region
      %39 = dma.done [#allocation3], 256
    $region17: #{tpu_custom_call.1} parent=1 // pred_fallthru
      _
    // Predicated region
    $region18: #{tpu_custom_call.1} parent=1 // pred_check
      _
    $region19: #{tpu_custom_call.1} parent=1 // pred_check_branch
      %41 = sbr.rel (0) target = $region21
    $region20: #{tpu_custom_call.1} parent=1 // pred_region
      %42 = dma.done [#allocation6], 256
    $region21: #{tpu_custom_call.1} parent=1 // pred_fallthru
      _
    %v44 = vld [vmem:[#allocation2] sm:$0xff]
    %v45 = vld [vmem:[#allocation2 + $0x8] sm:$0xff]
    %v46 = vpack.c.bf16 %v45, %v44
    %v47 = vld [vmem:[#allocation5] sm:$0xf]
    %v48 = vld [vmem:[#allocation5 + $0x4] sm:$0xf]
    %v49 = vld [vmem:[#allocation5 + $0x8] sm:$0xf]
    %v50 = vld [vmem:[#allocation5 + $0xc] sm:$0xf]
    %v51 = vld [vmem:[%s2] sm:$0x1]
    %v53 = vlaneseq
    %v54 = vshrl.u32 %v53, 7
    %v55 = vsub.s32 0, %v54
    %v56 = vrot.slane %v51, %v55
    %v62 = vunpack.c.l.b16 %v47
    %v63 = vunpack.c.l.b16 %v48
    %v64 = vunpack.c.l.b16 %v49
    %v65 = vunpack.c.l.b16 %v50
    %v66 = vpack.c.b16 %v63, %v62
    %v67 = vpack.c.b16 %v65, %v64
    %vm70 = vcmask 261120
    %v72 = vsel %vm70, %v46, 0
    %74 = vmatprep.subr.bf16.mxu0 0
    %75 = vmatpush1.bf16.msra.mxu0 %v66
    %76 = vmatprep.subr.bf16.mxu0 0
    %77 = vmatpush1.bf16.msra.mxu0 %v67
    %78 = vmatprep.subr.bf16.mxu0 0
    %79 = vmatpush1.bf16.msra.mxu0 0
    %80 = vmatprep.subr.bf16.mxu0 0
    %81 = vmatpush1.bf16.msra.mxu0 0
    %82 = vmatprep.subr.bf16.mxu0 0
    %83 = vmatpush1.bf16.msra.mxu0 0
    %84 = vmatprep.subr.bf16.mxu0 0
    %85 = vmatpush1.bf16.msra.mxu0 0
    %86 = vmatprep.subr.bf16.mxu0 0
    %87 = vmatpush1.bf16.msra.mxu0 0
    %88 = vmatprep.subr.bf16.mxu0 0
    %89 = vmatpush1.bf16.msra.mxu0 0
    %90 = vmatprep.subr.bf16.mxu0 0
    %91 = vmatpush1.bf16.msra.mxu0 0
    %92 = vmatprep.subr.bf16.mxu0 0
    %93 = vmatpush1.bf16.msra.mxu0 0
    %94 = vmatprep.subr.bf16.mxu0 0
    %95 = vmatpush1.bf16.msra.mxu0 0
    %96 = vmatprep.subr.bf16.mxu0 0
    %97 = vmatpush1.bf16.msra.mxu0 0
    %98 = vmatprep.subr.bf16.mxu0 0
    %99 = vmatpush1.bf16.msra.mxu0 0
    %100 = vmatprep.subr.bf16.mxu0 0
    %101 = vmatpush1.bf16.msra.mxu0 0
    %102 = vmatprep.subr.bf16.mxu0 0
    %103 = vmatpush1.bf16.msra.mxu0 0
    %104 = vmatprep.subr.bf16.mxu0 0
    %105 = vmatpush1.bf16.msra.mxu0 0
    %106 = vmatprep.mubr.bf16.mxu0 0
    %107 = vmatmul.mubr.bf16.gmra.mrb[0].mxu0 %v72
    %v108 = vpop.f32.mrb[0].mxu0
    %v109 = vadd.f32 %v56, %v108
    %v110 = vpop.f32.mrb[0].mxu0
    %v111 = vpop.f32.mrb[0].mxu0
    %v112 = vadd.f32 %v56, %v111
    %v113 = vpop.f32.mrb[0].mxu0
    %114 = vdwg.mxu0
    %v115 = vmul.f32 %v109, 0.35355338
    %v116 = vmul.f32 %v112, 0.35355338
    %v117 = vpack.c.bf16 %v116, %v115
    %v119 = vunpack.c.l.b16 %v117
    %v120 = vunpack.c.h.b16 %v117
    %v121 = vpack.c.b16 %v119, %v119
    %v122 = vpack.c.b16 %v120, %v120
    %vm125 = vcmask 257024
    %126 = vst.msk [vmem:[#allocation7] sm:$0xf] %vm125, %v121
    %127 = vst.msk [vmem:[#allocation7 + $0x4] sm:$0xf] %vm125, %v122
    // Predicated region
    $region22: #{tpu_custom_call.1} parent=1 // pred_check
      _
    $region23: #{tpu_custom_call.1} parent=1 // pred_check_branch
      %129 = sbr.rel (0) target = $region25
    $region24: #{tpu_custom_call.1} parent=1 // pred_region
      %s131 = ssub.s32 128, 128
      %132 = vsyncadd [#allocation4], %s131
      %s133 = sshll.u32 [#allocation7], 4
      %s134 = int_to_ptr.vmem [resolvable:$true] %s133
      %139 = dma.vmem_to_hbm [thread:$0]  %s134, 128, %s3, [#allocation4], 64, 64, 4
    $region25: #{tpu_custom_call.1} parent=1 // pred_fallthru
      _
    // Predicated region
    $region26: #{tpu_custom_call.1} parent=1 // pred_check
      _
    $region27: #{tpu_custom_call.1} parent=1 // pred_check_branch
      %141 = sbr.rel (0) target = $region29
    $region28: #{tpu_custom_call.1} parent=1 // pred_region
      %142 = dma.done [#allocation4], 128
    $region29: #{tpu_custom_call.1} parent=1 // pred_fallthru
      _
    %143 = vsyncpa [#allocation3], 1
    %144 = vsyncpa [#allocation6], 1
    %145 = vsyncpa [#allocation4], 1

</llo_original>
